<compile_context>
chip_gen: v7x
topology: tpu7x:2x2x1
jax: 0.10.0
libtpu: 0.0.40
codegen_flags: <defaults>
</compile_context>

<pallas_src>
import jax
import jax.numpy as jnp
from jax import lax
from jax.experimental import pallas as pl
from jax.experimental.pallas import tpu as pltpu


def _tpu_device_kind():
    try:
        for d in jax.devices():
            if d.platform == "tpu":
                return d.device_kind.lower()
    except Exception:
        pass
    return ""


def _make_masked_bce_kernel(M, N, tile_rows, chunk_rows, edge_start, need_edge):
    """Build the kernel body with all static sizes closed over."""
    n_chunks = tile_rows // chunk_rows
    fold8 = (chunk_rows % 8 == 0)

    def kernel(logits_ref, labels_ref, lsum_ref, msum_ref, lacc_ref, macc_ref):
        p = pl.program_id(0)
        s = pl.program_id(1)
        steps = pl.num_programs(1)

        @pl.when(s == 0)
        def _init():
            lacc_ref[...] = jnp.zeros_like(lacc_ref)
            macc_ref[...] = jnp.zeros_like(macc_ref)

        # Global block index; may exceed the number of real blocks (the
        # index_map clamps the DMA; the row mask below zeroes the extras).
        g = p * steps + s

        def accumulate(edge):
            # Chunked body: bounds the live f32 temporaries to ~chunk_rows x N
            # while keeping the large pipelined DMA block.
            def body(c, carry):
                r = pl.multiple_of(c * chunk_rows, chunk_rows)
                logits = logits_ref[pl.ds(r, chunk_rows), :].astype(jnp.float32)
                labels = labels_ref[pl.ds(r, chunk_rows), :].astype(jnp.float32)
                log_p = jnp.log(logits)
                log_1mp = jnp.log(1.0 - logits)   # matches torch.log(1 - logits)
                # labels*log(p) + (1-labels)*log(1-p); the -1 factor of the
                # PyTorch loss is hoisted into the wrapper's final scalar.
                loss = labels * (log_p - log_1mp) + log_1mp
                valid = labels != jnp.float32(-1.0)
                if edge:
                    # Ragged tail / fully-out-of-range block: drop rows >= M.
                    rem = M - g * tile_rows - r
                    row_ok = lax.broadcasted_iota(
                        jnp.int32, (chunk_rows, N), 0) < rem
                    valid = jnp.logical_and(valid, row_ok)
                # jnp.where (not multiply): garbage rows read past the array
                # end or inf losses at padded positions must not become NaN.
                masked = jnp.where(valid, loss, 0.0)
                valid_f = valid.astype(jnp.float32)
                if fold8:
                    lacc_ref[...] += masked.reshape(
                        chunk_rows // 8, 8, N).sum(axis=0)
                    macc_ref[...] += valid_f.reshape(
                        chunk_rows // 8, 8, N).sum(axis=0)
                else:  # tiny inputs (M < 8): single chunk narrower than 8 rows
                    lacc_ref[0:chunk_rows, :] += masked
                    macc_ref[0:chunk_rows, :] += valid_f
                return carry

            lax.fori_loop(0, n_chunks, body, 0, unroll=True)

        if not need_edge:
            accumulate(False)
        elif edge_start <= 0:
            accumulate(True)
        else:
            @pl.when(g < edge_start)
            def _fast():
                accumulate(False)

            @pl.when(g >= edge_start)
            def _edge():
                accumulate(True)

        @pl.when(s == steps - 1)
        def _finalize():
            lsum_ref[0, 0] = jnp.sum(lacc_ref[...])
            msum_ref[0, 0] = jnp.sum(macc_ref[...])

    return kernel


def custom_cross_entropy_loss(logits, labels):
    """Pallas implementation of CustomCrossEntropyLoss.forward -> scalar f32."""
    assert logits.shape == labels.shape
    if logits.ndim == 0:
        logits = logits.reshape(1, 1)
        labels = labels.reshape(1, 1)

    n_last = logits.shape[-1]
    logits2d = logits.reshape(-1, n_last)
    labels2d = labels.reshape(-1, n_last)
    # Keep float inputs (f32/bf16) as-is — the kernel upcasts to f32; only
    # cast non-float inputs.
    if not jnp.issubdtype(logits2d.dtype, jnp.floating):
        logits2d = logits2d.astype(jnp.float32)
    if not jnp.issubdtype(labels2d.dtype, jnp.floating):
        labels2d = labels2d.astype(jnp.float32)

    M, N = logits2d.shape

    # ---- Chip-aware tiling ------------------------------------------------
    kind = _tpu_device_kind()
    is_v7 = ("v7" in kind) or ("tpu7" in kind.replace(" ", ""))
    num_tc = 2 if is_v7 else 1                       # TensorCores per chip
    target_f32_block = (2 << 20) if is_v7 else (4 << 20)  # per-input f32 bytes
    vmem_cap = (40 << 20) if is_v7 else (48 << 20)   # 64 MiB vs 128 MiB parts

    row_f32 = N * 4
    if M >= 8:
        tile_rows = max(8, (target_f32_block // row_f32) // 8 * 8)
        tile_rows = min(tile_rows, (M // 8) * 8)
        chunk_rows = max(8, min(512, ((1 << 20) // row_f32) // 8 * 8))
        chunk_rows = min(chunk_rows, tile_rows)
        tile_rows = (tile_rows // chunk_rows) * chunk_rows
    else:
        tile_rows = M
        chunk_rows = M

    num_blocks = -(-M // tile_rows)
    num_partials = num_tc if num_blocks >= 2 else 1  # 2 partials only on v7x
    steps = -(-num_blocks // num_partials)
    total_grid_blocks = num_partials * steps

    ragged = (M % tile_rows) != 0
    edge_start = (num_blocks - 1) if ragged else num_blocks
    need_edge = edge_start < total_grid_blocks

    if total_grid_blocks == num_blocks:
        index_map = lambda p, s: (p * steps + s, 0)
    else:
        # Extra grid steps re-read the last real block; their rows are masked
        # out in-kernel, so no wrapper-side padding copy is needed.
        index_map = lambda p, s: (jnp.minimum(p * steps + s, num_blocks - 1), 0)

    itemsize = max(jnp.dtype(logits2d.dtype).itemsize,
                   jnp.dtype(labels2d.dtype).itemsize)
    dma_bytes = 2 * 2 * tile_rows * N * itemsize        # 2 inputs x 2 buffers
    temp_bytes = 8 * chunk_rows * N * 4                 # in-kernel f32 temps
    acc_bytes = 2 * 8 * N * 4
    vmem_limit = int(min(vmem_cap,
                         max(16 << 20,
                             dma_bytes + temp_bytes + acc_bytes + (4 << 20))))

    kernel = _make_masked_bce_kernel(M, N, tile_rows, chunk_rows,
                                     edge_start, need_edge)

    loss_sums, mask_sums = pl.pallas_call(
        kernel,
        out_shape=(
            jax.ShapeDtypeStruct((num_partials, 1), jnp.float32),
            jax.ShapeDtypeStruct((num_partials, 1), jnp.float32),
        ),
        grid_spec=pltpu.PrefetchScalarGridSpec(
            num_scalar_prefetch=0,
            grid=(num_partials, steps),
            in_specs=[
                pl.BlockSpec((tile_rows, N), index_map),
                pl.BlockSpec((tile_rows, N), index_map),
            ],
            out_specs=(
                pl.BlockSpec((1, 1), lambda p, s: (p, 0),
                             memory_space=pltpu.SMEM),
                pl.BlockSpec((1, 1), lambda p, s: (p, 0),
                             memory_space=pltpu.SMEM),
            ),
            scratch_shapes=[
                pltpu.VMEM((8, N), jnp.float32),  # running loss partials
                pltpu.VMEM((8, N), jnp.float32),  # running mask partials
            ],
        ),
        compiler_params=pltpu.CompilerParams(
            dimension_semantics=("parallel", "arbitrary"),
            vmem_limit_bytes=vmem_limit,
        ),
    )(logits2d, labels2d)

    # The -1 factor of the PyTorch loss was hoisted out of the kernel.
    return -jnp.sum(loss_sums) / jnp.sum(mask_sums)


def _reference(logits, labels):
    mask = (labels != -1.0).astype(jnp.float32)
    losses = -(labels * jnp.log(logits) + (1.0 - labels) * jnp.log(1.0 - logits))
    return jnp.sum(losses * mask) / jnp.sum(mask)


if __name__ == "__main__":
    key = jax.random.PRNGKey(0)

    def make_case(key, shape):
        k1, k2, k3 = jax.random.split(key, 3)
        logits = jax.nn.sigmoid(jax.random.normal(k1, shape, dtype=jnp.float32))
        labels = jax.random.bernoulli(k2, 0.5, shape).astype(jnp.float32)
        pad = jax.random.bernoulli(k3, 0.2, shape)
        labels = jnp.where(pad, jnp.float32(-1.0), labels)
        return logits, labels

    k_a, k_b = jax.random.split(key)

    # Case 1: simple 2-D (batch=16, events=256): single full block, fast path.
    logits_a, labels_a = make_case(k_a, (16, 256))
    loss_a = jax.block_until_ready(custom_cross_entropy_loss(logits_a, labels_a))
    ref_a = _reference(logits_a, labels_a)
    assert jnp.allclose(loss_a, ref_a, rtol=1e-5, atol=1e-5), (loss_a, ref_a)

    # Case 2: 3-D input whose flattened rows (20) exercise the in-kernel
    # ragged-tail masking (no wrapper padding copy).
    logits_b, labels_b = make_case(k_b, (2, 10, 256))
    loss_b = jax.block_until_ready(custom_cross_entropy_loss(logits_b, labels_b))
    ref_b = _reference(logits_b, labels_b)
    assert jnp.allclose(loss_b, ref_b, rtol=1e-5, atol=1e-5), (loss_b, ref_b)

    print("KERNEL_OK")
</pallas_src>

<mosaic_0001>
module attributes {stable_mosaic.version = 11 : i64} {
  func.func @kernel(%arg0: i32, %arg1: i32, %arg2: memref<16x256xf32, #tpu.memory_space<vmem>>, %arg3: memref<16x256xf32, #tpu.memory_space<vmem>>, %arg4: memref<1x1xf32, #tpu.memory_space<smem>>, %arg5: memref<1x1xf32, #tpu.memory_space<smem>>, %arg6: memref<8x256xf32, #tpu.memory_space<vmem>>, %arg7: memref<8x256xf32, #tpu.memory_space<vmem>>) attributes {dimension_semantics = [#tpu.dimension_semantics<parallel>, #tpu.dimension_semantics<arbitrary>], iteration_bounds = array<i64: 1, 1>, scalar_prefetch = 0 : i64, scratch_operands = 2 : i64, tpu.core_type = #tpu.core_type<tc>, window_params = [{transform_indices = @transform_0, window_bounds = array<i64: 16, 256>}, {transform_indices = @transform_1, window_bounds = array<i64: 16, 256>}, {transform_indices = @transform_2, window_bounds = array<i64: 1, 1>}, {transform_indices = @transform_3, window_bounds = array<i64: 1, 1>}]} {
    %c0_i32 = arith.constant 0 : i32
    %0 = arith.cmpi eq, %arg1, %c0_i32 : i32
    %1 = arith.extui %0 : i1 to i32
    %c0_i32_0 = arith.constant 0 : i32
    %2 = arith.cmpi ne, %1, %c0_i32_0 : i32
    scf.if %2 {
      %cst_17 = arith.constant 0.000000e+00 : f32
      %35 = vector.broadcast %cst_17 : f32 to vector<8x256xf32>
      %c0_18 = arith.constant 0 : index
      %c0_19 = arith.constant 0 : index
      %36 = vector.load %arg6[%c0_18, %c0_19] : memref<8x256xf32, #tpu.memory_space<vmem>>, vector<8x256xf32>
      tpu.vector_store %arg6[%c0_18, %c0_19], %35 {strides = array<i32>} : memref<8x256xf32, #tpu.memory_space<vmem>>, vector<8x256xf32>,
      %cst_20 = arith.constant 0.000000e+00 : f32
      %37 = vector.broadcast %cst_20 : f32 to vector<8x256xf32>
      %c0_21 = arith.constant 0 : index
      %c0_22 = arith.constant 0 : index
      %38 = vector.load %arg7[%c0_21, %c0_22] : memref<8x256xf32, #tpu.memory_space<vmem>>, vector<8x256xf32>
      tpu.vector_store %arg7[%c0_21, %c0_22], %37 {strides = array<i32>} : memref<8x256xf32, #tpu.memory_space<vmem>>, vector<8x256xf32>,
    } else {
    }
    %c0_i32_1 = arith.constant 0 : i32
    %c16_i32 = arith.constant 16 : i32
    %3 = arith.muli %c0_i32_1, %c16_i32 : i32
    %4 = tpu.assume_multiple %3, 16 : i32
    %5 = arith.index_cast %4 : i32 to index
    %c0 = arith.constant 0 : index
    %6 = vector.load %arg2[%5, %c0] : memref<16x256xf32, #tpu.memory_space<vmem>>, vector<16x256xf32>
    %7 = arith.index_cast %4 : i32 to index
    %c0_2 = arith.constant 0 : index
    %8 = vector.load %arg3[%7, %c0_2] : memref<16x256xf32, #tpu.memory_space<vmem>>, vector<16x256xf32>
    %9 = math.log %6 : vector<16x256xf32>
    %cst = arith.constant 1.000000e+00 : f32
    %10 = vector.broadcast %cst : f32 to vector<16x256xf32>
    %11 = arith.subf %10, %6 : vector<16x256xf32>
    %12 = math.log %11 : vector<16x256xf32>
    %13 = arith.subf %9, %12 : vector<16x256xf32>
    %14 = arith.mulf %8, %13 : vector<16x256xf32>
    %15 = arith.addf %14, %12 : vector<16x256xf32>
    %cst_3 = arith.constant -1.000000e+00 : f32
    %16 = vector.broadcast %cst_3 : f32 to vector<16x256xf32>
    %17 = arith.cmpf one, %8, %16 : vector<16x256xf32>
    %cst_4 = arith.constant 0.000000e+00 : f32
    %18 = vector.broadcast %cst_4 : f32 to vector<16x256xf32>
    %19 = arith.select %17, %15, %18 : vector<16x256xi1>, vector<16x256xf32>
    %20 = arith.extui %17 : vector<16x256xi1> to vector<16x256xi32>
    %21 = arith.sitofp %20 : vector<16x256xi32> to vector<16x256xf32>
    %c0_5 = arith.constant 0 : index
    %c0_6 = arith.constant 0 : index
    %22 = vector.load %arg6[%c0_5, %c0_6] : memref<8x256xf32, #tpu.memory_space<vmem>>, vector<8x256xf32>
    %23 = vector.shape_cast %19 : vector<16x256xf32> to vector<2x8x256xf32>
    %cst_7 = arith.constant dense<0.000000e+00> : vector<8x256xf32>
    %24 = vector.multi_reduction <add>, %23, %cst_7 [0] : vector<2x8x256xf32> to vector<8x256xf32>
    %25 = arith.addf %22, %24 : vector<8x256xf32>
    %c0_8 = arith.constant 0 : index
    %c0_9 = arith.constant 0 : index
    %26 = vector.load %arg6[%c0_8, %c0_9] : memref<8x256xf32, #tpu.memory_space<vmem>>, vector<8x256xf32>
    tpu.vector_store %arg6[%c0_8, %c0_9], %25 {strides = array<i32>} : memref<8x256xf32, #tpu.memory_space<vmem>>, vector<8x256xf32>,
    %c0_10 = arith.constant 0 : index
    %c0_11 = arith.constant 0 : index
    %27 = vector.load %arg7[%c0_10, %c0_11] : memref<8x256xf32, #tpu.memory_space<vmem>>, vector<8x256xf32>
    %28 = vector.shape_cast %21 : vector<16x256xf32> to vector<2x8x256xf32>
    %cst_12 = arith.constant dense<0.000000e+00> : vector<8x256xf32>
    %29 = vector.multi_reduction <add>, %28, %cst_12 [0] : vector<2x8x256xf32> to vector<8x256xf32>
    %30 = arith.addf %27, %29 : vector<8x256xf32>
    %c0_13 = arith.constant 0 : index
    %c0_14 = arith.constant 0 : index
    %31 = vector.load %arg7[%c0_13, %c0_14] : memref<8x256xf32, #tpu.memory_space<vmem>>, vector<8x256xf32>
    tpu.vector_store %arg7[%c0_13, %c0_14], %30 {strides = array<i32>} : memref<8x256xf32, #tpu.memory_space<vmem>>, vector<8x256xf32>,
    %c1_i32 = arith.constant 1 : i32
    %c0_i32_15 = arith.constant 0 : i32
    %32 = arith.cmpi eq, %arg1, %c0_i32_15 : i32
    %33 = arith.extui %32 : i1 to i32
    %c0_i32_16 = arith.constant 0 : i32
    %34 = arith.cmpi ne, %33, %c0_i32_16 : i32
    scf.if %34 {
      %c0_17 = arith.constant 0 : index
      %c0_18 = arith.constant 0 : index
      %35 = vector.load %arg6[%c0_17, %c0_18] : memref<8x256xf32, #tpu.memory_space<vmem>>, vector<8x256xf32>
      %36 = vector.shape_cast %35 : vector<8x256xf32> to vector<1x8x256xf32>
      %cst_19 = arith.constant dense<0.000000e+00> : vector<1xf32>
      %37 = vector.multi_reduction <add>, %36, %cst_19 [1, 2] : vector<1x8x256xf32> to vector<1xf32>
      %38 = vector.shape_cast %37 : vector<1xf32> to vector<1x1x1xf32>
      %39 = vector.extract %38[0, 0, 0] : f32 from vector<1x1x1xf32>
      %c0_20 = arith.constant 0 : index
      %c0_21 = arith.constant 0 : index
      %40 = memref.load %arg4[%c0_20, %c0_21] : memref<1x1xf32, #tpu.memory_space<smem>>
      memref.store %39, %arg4[%c0_20, %c0_21] : memref<1x1xf32, #tpu.memory_space<smem>>
      %c0_22 = arith.constant 0 : index
      %c0_23 = arith.constant 0 : index
      %41 = vector.load %arg7[%c0_22, %c0_23] : memref<8x256xf32, #tpu.memory_space<vmem>>, vector<8x256xf32>
      %42 = vector.shape_cast %41 : vector<8x256xf32> to vector<1x8x256xf32>
      %cst_24 = arith.constant dense<0.000000e+00> : vector<1xf32>
      %43 = vector.multi_reduction <add>, %42, %cst_24 [1, 2] : vector<1x8x256xf32> to vector<1xf32>
      %44 = vector.shape_cast %43 : vector<1xf32> to vector<1x1x1xf32>
      %45 = vector.extract %44[0, 0, 0] : f32 from vector<1x1x1xf32>
      %c0_25 = arith.constant 0 : index
      %c0_26 = arith.constant 0 : index
      %46 = memref.load %arg5[%c0_25, %c0_26] : memref<1x1xf32, #tpu.memory_space<smem>>
      memref.store %45, %arg5[%c0_25, %c0_26] : memref<1x1xf32, #tpu.memory_space<smem>>
    } else {
    }
    return
  }
  func.func @transform_0(%arg0: i32, %arg1: i32) -> (i32, i32) {
    %c1_i32 = arith.constant 1 : i32
    %0 = arith.muli %arg0, %c1_i32 : i32
    %1 = arith.addi %0, %arg1 : i32
    %c0_i32 = arith.constant 0 : i32
    %c0_i32_0 = arith.constant 0 : i32
    return %1, %c0_i32 : i32, i32
  }
  func.func @transform_1(%arg0: i32, %arg1: i32) -> (i32, i32) {
    %c1_i32 = arith.constant 1 : i32
    %0 = arith.muli %arg0, %c1_i32 : i32
    %1 = arith.addi %0, %arg1 : i32
    %c0_i32 = arith.constant 0 : i32
    %c0_i32_0 = arith.constant 0 : i32
    return %1, %c0_i32 : i32, i32
  }
  func.func @transform_2(%arg0: i32, %arg1: i32) -> (i32, i32) {
    %c0_i32 = arith.constant 0 : i32
    %c0_i32_0 = arith.constant 0 : i32
    return %arg0, %c0_i32 : i32, i32
  }
  func.func @transform_3(%arg0: i32, %arg1: i32) -> (i32, i32) {
    %c0_i32 = arith.constant 0 : i32
    %c0_i32_0 = arith.constant 0 : i32
    return %arg0, %c0_i32 : i32, i32
  }
}

</mosaic_0001>

<llo_original>
// kernel: tpu_custom_call.1
$region0: #{tpu_custom_call.1}
  #allocation0 [shape = 'u32[]', space=smem, size = 0x4, offset = 0x4, fixed_abs, tag = 'smem constant byte address 0x4 - core index']
  #allocation1 [shape = 'u32[144,128]{1,0:T(1,128)}', space=vmem, size = 0x12000, scoped, tag = 'internal scratch']
  #allocation2 [shape = 'f32[8,256]{1,0:T(8,128)}', space=vmem, size = 0x2000, scoped, tag = 'scratch operand']
  #allocation3 [shape = 'f32[8,256]{1,0:T(8,128)}', space=vmem, size = 0x2000, scoped, tag = 'scratch operand']
  %s0 = inlined_call_operand.hbm [shape: f32[16,256], index: 0, kind: input, shape index: {}]
  %s1 = inlined_call_operand.hbm [shape: f32[16,256], index: 1, kind: input, shape index: {}]
  %s2 = inlined_call_operand.hbm [shape: f32[1,1], index: 2, kind: output, shape index: {0}]
  %s3 = inlined_call_operand.hbm [shape: f32[1,1], index: 3, kind: output, shape index: {1}]
  %4 = xla_tuple %s2, %s3
  %s5 = sld [smem:[#allocation0]]
  $region42: #{tpu_custom_call.1} parent=0
    _
  %s7 = ssub.s32 1, %s5
  %s8 = scalar_select 0, %s7, %s5
  $region1: #{tpu_custom_call.1} parent=0
    #allocation4 [shape = 'u8[16384]{0}', space=vmem, size = 0x4000, scoped, tag = 'input window, operand 0, single buffered']
    #allocation5 [shape = 's32[1]{0}', space=sflag, size = 0x4, scoped, tag = 'scoped memory for tpu_custom_call.1']
    #allocation6 [shape = 's32[1]{0}', space=sflag, size = 0x4, scoped, tag = 'scoped memory for tpu_custom_call.1']
    #allocation7 [shape = 'u8[16384]{0}', space=vmem, size = 0x4000, scoped, tag = 'input window, operand 1, single buffered']
    #allocation8 [shape = 's32[1]{0}', space=sflag, size = 0x4, scoped, tag = 'scoped memory for tpu_custom_call.1']
    #allocation9 [shape = 'u8[512]{0}', space=smem, size = 0x200, scoped, tag = 'output window, operand 0, single buffered']
    #allocation10 [shape = 'u8[512]{0}', space=smem, size = 0x200, scoped, tag = 'output window, operand 1, single buffered']
    #allocation11 [shape = 's32[1]{0}', space=sflag, size = 0x4, scoped, tag = 'scoped memory for tpu_custom_call.1']
    %9 = vsyncpa [#allocation5], 0
    %10 = vsyncpa [#allocation8], 0
    %11 = vsyncpa [#allocation6], 0
    %12 = vsyncpa [#allocation11], 0
    // Predicated region
    $region2: #{tpu_custom_call.1} parent=1 // pred_check
      _
    $region3: #{tpu_custom_call.1} parent=1 // pred_check_branch
      %14 = sbr.rel (0) target = $region5
    $region4: #{tpu_custom_call.1} parent=1 // pred_region
      %s15 = sadd.s32 0, 0
      %s16 = smul.u32 2, %s15
      %s18 = ssub.s32 512, 512
      %19 = vsyncadd [#allocation5], %s18
      %s20 = smul.addr %s16, 2
      %s21 = smul.addr %s20, 128
      %s22 = scalar_lea.hbm %s0, %s21
      %s23 = sshll.u32 [#allocation4], 4
      %s24 = int_to_ptr.vmem [resolvable:$true] %s23
      %29 = dma.hbm_to_vmem [thread:$0]  %s22, 512, %s24, [#allocation5], 256, 256, 16
    $region5: #{tpu_custom_call.1} parent=1 // pred_fallthru
      _
    // Predicated region
    $region6: #{tpu_custom_call.1} parent=1 // pred_check
      _
    $region7: #{tpu_custom_call.1} parent=1 // pred_check_branch
      %31 = sbr.rel (0) target = $region9
    $region8: #{tpu_custom_call.1} parent=1 // pred_region
      %s32 = sadd.s32 0, 0
      %s33 = smul.u32 2, %s32
      %s35 = ssub.s32 512, 512
      %36 = vsyncadd [#allocation8], %s35
      %s37 = smul.addr %s33, 2
      %s38 = smul.addr %s37, 128
      %s39 = scalar_lea.hbm %s1, %s38
      %s40 = sshll.u32 [#allocation7], 4
      %s41 = int_to_ptr.vmem [resolvable:$true] %s40
      %46 = dma.hbm_to_vmem [thread:$0]  %s39, 512, %s41, [#allocation8], 256, 256, 16
    $region9: #{tpu_custom_call.1} parent=1 // pred_fallthru
      _
    // Predicated region
    $region10: #{tpu_custom_call.1} parent=1 // pred_check
      _
    $region11: #{tpu_custom_call.1} parent=1 // pred_check_branch
      %48 = sbr.rel (0) target = $region13
    $region12: #{tpu_custom_call.1} parent=1 // pred_region
      %49 = dma.done [#allocation5], 512
    $region13: #{tpu_custom_call.1} parent=1 // pred_fallthru
      _
    // Predicated region
    $region14: #{tpu_custom_call.1} parent=1 // pred_check
      _
    $region15: #{tpu_custom_call.1} parent=1 // pred_check_branch
      %51 = sbr.rel (0) target = $region17
    $region16: #{tpu_custom_call.1} parent=1 // pred_region
      %52 = dma.done [#allocation8], 512
    $region17: #{tpu_custom_call.1} parent=1 // pred_fallthru
      _
    %s53 = sadd.s32 0, 0
    %s54 = smul.u32 2, %s53
    %s55 = sadd.s32 0, 0
    %s56 = smul.u32 2, %s55
    %p57 = scmp.eq.s32.totalorder 0, 0
    // Predicated region
    $region18: #{tpu_custom_call.1} parent=1 // pred_check
      %p58 = pneg %p57
    $region19: #{tpu_custom_call.1} parent=1 // pred_check_branch
      %60 = sbr.rel (%p58) target = $region21
    $region20: #{tpu_custom_call.1} parent=1 // pred_region
      %61 = vst [vmem:[#allocation2] sm:$0xff] 0.0
      %62 = vst [vmem:[#allocation2 + $0x8] sm:$0xff] 0.0
      %63 = vst [vmem:[#allocation3] sm:$0xff] 0.0
      %64 = vst [vmem:[#allocation3 + $0x8] sm:$0xff] 0.0
    $region21: #{tpu_custom_call.1} parent=1 // pred_fallthru
      _
    %s65 = smul.u32 0, 2
    %s66 = smul.addr %s65, 8
    %s67 = scalar_lea.vmem [#allocation4], %s66
    %v68 = vld [vmem:[%s67] sm:$0xff]
    %v69 = vld [vmem:[%s67 + $0x8] sm:$0xff]
    %v70 = vld [vmem:[%s67 + $0x10] sm:$0xff]
    %v71 = vld [vmem:[%s67 + $0x18] sm:$0xff]
    %s72 = smul.addr %s65, 8
    %s73 = scalar_lea.vmem [#allocation7], %s72
    %v74 = vld [vmem:[%s73] sm:$0xff]
    %v75 = vld [vmem:[%s73 + $0x8] sm:$0xff]
    %v76 = vld [vmem:[%s73 + $0x10] sm:$0xff]
    %v77 = vld [vmem:[%s73 + $0x18] sm:$0xff]
    %v78 = vlog2.pop %v68
    %v79 = vmul.f32 %v78, 0.6931472
    %v80 = vlog2.pop %v69
    %v81 = vmul.f32 %v80, 0.6931472
    %v82 = vlog2.pop %v70
    %v83 = vmul.f32 %v82, 0.6931472
    %v84 = vlog2.pop %v71
    %v85 = vmul.f32 %v84, 0.6931472
    %v86 = vsub.f32 1.0, %v68
    %v87 = vsub.f32 1.0, %v69
    %v88 = vsub.f32 1.0, %v70
    %v89 = vsub.f32 1.0, %v71
    %v90 = vlog2.pop %v86
    %v91 = vmul.f32 %v90, 0.6931472
    %v92 = vlog2.pop %v87
    %v93 = vmul.f32 %v92, 0.6931472
    %v94 = vlog2.pop %v88
    %v95 = vmul.f32 %v94, 0.6931472
    %v96 = vlog2.pop %v89
    %v97 = vmul.f32 %v96, 0.6931472
    %v98 = vsub.f32 %v79, %v91
    %v99 = vsub.f32 %v81, %v93
    %v100 = vsub.f32 %v83, %v95
    %v101 = vsub.f32 %v85, %v97
    %v102 = vmul.f32 %v74, %v98
    %v103 = vmul.f32 %v75, %v99
    %v104 = vmul.f32 %v76, %v100
    %v105 = vmul.f32 %v77, %v101
    %v106 = vadd.f32 %v102, %v91
    %v107 = vadd.f32 %v103, %v93
    %v108 = vadd.f32 %v104, %v95
    %v109 = vadd.f32 %v105, %v97
    %vm110 = vcmp.ne.f32.partialorder %v74, -1.0
    %vm111 = vcmp.ne.f32.partialorder %v75, -1.0
    %vm112 = vcmp.ne.f32.partialorder %v76, -1.0
    %vm113 = vcmp.ne.f32.partialorder %v77, -1.0
    %v114 = vsel %vm110, %v106, 0.0
    %v115 = vsel %vm111, %v107, 0.0
    %v116 = vsel %vm112, %v108, 0.0
    %v117 = vsel %vm113, %v109, 0.0
    %v118 = vsel %vm110, 1, 0
    %v119 = vsel %vm111, 1, 0
    %v120 = vsel %vm112, 1, 0
    %v121 = vsel %vm113, 1, 0
    %v122 = vcvt.s32.f32 %v118
    %v123 = vcvt.s32.f32 %v119
    %v124 = vcvt.s32.f32 %v120
    %v125 = vcvt.s32.f32 %v121
    %v126 = vld [vmem:[#allocation2] sm:$0xff]
    %v127 = vld [vmem:[#allocation2 + $0x8] sm:$0xff]
    %v128 = vadd.f32 %v114, %v116
    %v129 = vadd.f32 %v115, %v117
    %v130 = vadd.f32 %v126, %v128
    %v131 = vadd.f32 %v127, %v129
    %132 = vst [vmem:[#allocation2] sm:$0xff] %v130
    %133 = vst [vmem:[#allocation2 + $0x8] sm:$0xff] %v131
    %v134 = vld [vmem:[#allocation3] sm:$0xff]
    %v135 = vld [vmem:[#allocation3 + $0x8] sm:$0xff]
    %v136 = vadd.f32 %v122, %v124
    %v137 = vadd.f32 %v123, %v125
    %v138 = vadd.f32 %v134, %v136
    %v139 = vadd.f32 %v135, %v137
    %140 = vst [vmem:[#allocation3] sm:$0xff] %v138
    %141 = vst [vmem:[#allocation3 + $0x8] sm:$0xff] %v139
    // Predicated region
    $region22: #{tpu_custom_call.1} parent=1 // pred_check
      %p142 = pneg %p57
    $region23: #{tpu_custom_call.1} parent=1 // pred_check_branch
      %144 = sbr.rel (%p142) target = $region25
    $region24: #{tpu_custom_call.1} parent=1 // pred_region
      %v145 = vld [vmem:[#allocation2] sm:$0xff]
      %v146 = vld [vmem:[#allocation2 + $0x8] sm:$0xff]
      %v147 = vadd.f32 %v145, %v146
      %148 = vadd.xlane.f32.xlu0 %v147
      %v149 = vpop.xlane.xlu0 %148
      %v150 = vrot.slane %v149, 4
      %v151 = vadd.f32 %v149, %v150
      %v152 = vrot.slane %v151, 2
      %v153 = vadd.f32 %v151, %v152
      %v154 = vrot.slane %v153, 1
      %v155 = vadd.f32 %v153, %v154
      %s156 = vtos %v155
      %s157 = scalar_lea.smem [#allocation9], 0
      %158 = sst [smem:[%s157]] %s156
      %v159 = vld [vmem:[#allocation3] sm:$0xff]
      %v160 = vld [vmem:[#allocation3 + $0x8] sm:$0xff]
      %v161 = vadd.f32 %v159, %v160
      %162 = vadd.xlane.f32.xlu0 %v161
      %v163 = vpop.xlane.xlu0 %162
      %v164 = vrot.slane %v163, 4
      %v165 = vadd.f32 %v163, %v164
      %v166 = vrot.slane %v165, 2
      %v167 = vadd.f32 %v165, %v166
      %v168 = vrot.slane %v167, 1
      %v169 = vadd.f32 %v167, %v168
      %s170 = vtos %v169
      %s171 = scalar_lea.smem [#allocation10], 0
      %172 = sst [smem:[%s171]] %s170
    $region25: #{tpu_custom_call.1} parent=1 // pred_fallthru
      _
    // Predicated region
    $region26: #{tpu_custom_call.1} parent=1 // pred_check
      _
    $region27: #{tpu_custom_call.1} parent=1 // pred_check_branch
      %174 = sbr.rel (0) target = $region29
    $region28: #{tpu_custom_call.1} parent=1 // pred_region
      %s176 = ssub.s32 16, 16
      %177 = vsyncadd [#allocation6], %s176
      %180 = dma.smem_to_hbm [#allocation9], 16, %s2, [#allocation6]
    $region29: #{tpu_custom_call.1} parent=1 // pred_fallthru
      _
    // Predicated region
    $region30: #{tpu_custom_call.1} parent=1 // pred_check
      _
    $region31: #{tpu_custom_call.1} parent=1 // pred_check_branch
      %182 = sbr.rel (0) target = $region33
    $region32: #{tpu_custom_call.1} parent=1 // pred_region
      %s184 = ssub.s32 16, 16
      %185 = vsyncadd [#allocation11], %s184
      %188 = dma.smem_to_hbm [#allocation10], 16, %s3, [#allocation11]
    $region33: #{tpu_custom_call.1} parent=1 // pred_fallthru
      _
    // Predicated region
    $region34: #{tpu_custom_call.1} parent=1 // pred_check
      _
    $region35: #{tpu_custom_call.1} parent=1 // pred_check_branch
      %190 = sbr.rel (0) target = $region37
    $region36: #{tpu_custom_call.1} parent=1 // pred_region
      %191 = dma.done [#allocation6], 16
    $region37: #{tpu_custom_call.1} parent=1 // pred_fallthru
      _
    // Predicated region
    $region38: #{tpu_custom_call.1} parent=1 // pred_check
      _
    $region39: #{tpu_custom_call.1} parent=1 // pred_check_branch
      %193 = sbr.rel (0) target = $region41
    $region40: #{tpu_custom_call.1} parent=1 // pred_region
      %194 = dma.done [#allocation11], 16
    $region41: #{tpu_custom_call.1} parent=1 // pred_fallthru
      _
    %195 = sfence
    %196 = vsyncpa [#allocation5], 1
    %197 = vsyncpa [#allocation8], 1
    %198 = vsyncpa [#allocation6], 1
    %199 = vsyncpa [#allocation11], 1

</llo_original>
